<compile_context>
chip_gen: v5e
topology: v5e:2x2
jax: 0.10.0
libtpu: 0.0.40
codegen_flags: <defaults>
</compile_context>

<pallas_src>
import functools

import jax
import jax.numpy as jnp
from jax.experimental import pallas as pl
from jax.experimental.pallas import tpu as pltpu

_LANE = 128       # lane width: output last dim is padded to a multiple of this
_TB_LARGE = 256   # batch tile used once B is large enough to be worth pipelining


def _mlp_kernel(x_ref, w1_ref, b1_ref, w2_ref, b2_ref, o_ref):
    # x:  (TB, S)      w1: (S, H)      b1: (1, H)
    # w2: (H, A_pad)   b2: (1, A_pad)  o:  (TB, A_pad)   (A_pad lane-dense)
    x = x_ref[...]
    h = jnp.dot(x, w1_ref[...], preferred_element_type=jnp.float32) + b1_ref[...]
    h = jnp.maximum(h, 0.0)  # ReLU
    out = jnp.dot(h, w2_ref[...], preferred_element_type=jnp.float32) + b2_ref[...]
    o_ref[...] = out.astype(o_ref.dtype)


def prepare_params(w1, b1, w2, b2):
    """One-time parameter preparation (hoisted out of the per-call hot path).

    PyTorch layout in : w1 (H, S), b1 (H,), w2 (A, H), b2 (A,)
    Kernel layout out : w1t (S, H), b1 (1, H), w2t (H, A_pad), b2 (1, A_pad),
                        with A padded up to a multiple of 128 lanes (zeros).
    Returns (params_tuple, action_num).
    """
    H, S = w1.shape
    A = w2.shape[0]
    a_pad = ((A + _LANE - 1) // _LANE) * _LANE

    w1t = jnp.asarray(w1, jnp.float32).T                                   # (S, H)
    b1r = jnp.asarray(b1, jnp.float32).reshape(1, H)                       # (1, H)
    w2t = jnp.zeros((H, a_pad), jnp.float32).at[:, :A].set(
        jnp.asarray(w2, jnp.float32).T)                                    # (H, A_pad)
    b2r = jnp.zeros((1, a_pad), jnp.float32).at[:, :A].set(
        jnp.asarray(b2, jnp.float32))                                      # (1, A_pad)
    return (w1t, b1r, w2t, b2r), A


@functools.partial(jax.jit, static_argnames=("action_num",))
def net_forward(x, params, action_num):
    """Forward pass of Net using a single fused Pallas kernel.

    x: (B, STATE_NUM) float32; params from prepare_params().
    Returns (B, ACTION_NUM) float32.
    """
    w1t, b1r, w2t, b2r = params
    x = jnp.asarray(x, jnp.float32)
    B, S = x.shape
    H = w1t.shape[1]
    a_pad = w2t.shape[1]

    # Batch tiling decision is static on shapes (resolved at trace time).
    if B > _TB_LARGE:
        tb = _TB_LARGE
        b_pad = ((B + tb - 1) // tb) * tb
        if b_pad != B:
            x = jnp.pad(x, ((0, b_pad - B), (0, 0)))
    else:
        tb = B           # single full-array block: no grid-step overhead
        b_pad = B

    grid = (b_pad // tb,)

    out = pl.pallas_call(
        _mlp_kernel,
        out_shape=jax.ShapeDtypeStruct((b_pad, a_pad), jnp.float32),
        grid=grid,
        in_specs=[
            pl.BlockSpec((tb, S), lambda i: (i, 0)),       # x: tiled over batch
            pl.BlockSpec((S, H), lambda i: (0, 0)),        # weights stay VMEM-resident
            pl.BlockSpec((1, H), lambda i: (0, 0)),
            pl.BlockSpec((H, a_pad), lambda i: (0, 0)),
            pl.BlockSpec((1, a_pad), lambda i: (0, 0)),
        ],
        out_specs=pl.BlockSpec((tb, a_pad), lambda i: (i, 0)),
        compiler_params=pltpu.CompilerParams(
            dimension_semantics=("parallel",)),            # v7x: split batch across 2 TCs
    )(x, w1t, b1r, w2t, b2r)

    # Slice back to true batch / ACTION_NUM (fused by jit, negligible).
    return out[:B, :action_num]


def init_params(key, state_num, action_num, hidden_num):
    """Deterministic init mirroring the PyTorch module:
    weights ~ Normal(0, 0.1); biases keep PyTorch Linear default
    Uniform(-1/sqrt(fan_in), 1/sqrt(fan_in))."""
    k1, k2, k3, k4 = jax.random.split(key, 4)
    w1 = 0.1 * jax.random.normal(k1, (hidden_num, state_num), jnp.float32)
    bound1 = 1.0 / jnp.sqrt(jnp.float32(state_num))
    b1 = jax.random.uniform(k2, (hidden_num,), jnp.float32, -bound1, bound1)
    w2 = 0.1 * jax.random.normal(k3, (action_num, hidden_num), jnp.float32)
    bound2 = 1.0 / jnp.sqrt(jnp.float32(hidden_num))
    b2 = jax.random.uniform(k4, (action_num,), jnp.float32, -bound2, bound2)
    return w1, b1, w2, b2


if __name__ == "__main__":
    STATE_NUM, ACTION_NUM, HIDDEN = 4, 2, 32
    BATCH = 2

    key = jax.random.PRNGKey(0)
    kx, kp, kx2 = jax.random.split(key, 3)
    w1, b1, w2, b2 = init_params(kp, STATE_NUM, ACTION_NUM, HIDDEN)

    # One-time parameter prep (outside the hot path).
    params, action_num = prepare_params(w1, b1, w2, b2)

    def ref_fwd(xin):
        return jnp.maximum(xin @ w1.T + b1, 0.0) @ w2.T + b2

    # Small batch (single full-array block path).
    x_small = jax.random.normal(kx, (BATCH, STATE_NUM), jnp.float32)
    out_small = net_forward(x_small, params, action_num)
    jax.block_until_ready(out_small)
    assert out_small.shape == (BATCH, ACTION_NUM)
    assert jnp.allclose(out_small, ref_fwd(x_small), atol=1e-5, rtol=1e-5)

    # Larger batch (tiled + padded path; exercises the batch grid).
    B_LARGE = 600  # not a multiple of the tile -> also exercises padding/slice
    x_large = jax.random.normal(kx2, (B_LARGE, STATE_NUM), jnp.float32)
    out_large = net_forward(x_large, params, action_num)
    jax.block_until_ready(out_large)
    assert out_large.shape == (B_LARGE, ACTION_NUM)
    assert jnp.allclose(out_large, ref_fwd(x_large), atol=1e-4, rtol=1e-4)

    print("KERNEL_OK")
</pallas_src>

<mosaic_0001>
module attributes {stable_mosaic.version = 11 : i64} {
  func.func @_mlp_kernel(%arg0: i32, %arg1: memref<2x4xf32, #tpu.memory_space<vmem>>, %arg2: memref<4x32xf32, #tpu.memory_space<vmem>>, %arg3: memref<1x32xf32, #tpu.memory_space<vmem>>, %arg4: memref<32x128xf32, #tpu.memory_space<vmem>>, %arg5: memref<1x128xf32, #tpu.memory_space<vmem>>, %arg6: memref<2x128xf32, #tpu.memory_space<vmem>>) attributes {dimension_semantics = [#tpu.dimension_semantics<parallel>], iteration_bounds = array<i64: 1>, scalar_prefetch = 0 : i64, scratch_operands = 0 : i64, tpu.core_type = #tpu.core_type<tc>, window_params = [{transform_indices = @transform_0, window_bounds = array<i64: 2, 4>}, {pipeline_mode = #tpu.pipeline_mode<synchronous>, transform_indices = @transform_1, window_bounds = array<i64: 4, 32>}, {pipeline_mode = #tpu.pipeline_mode<synchronous>, transform_indices = @transform_2, window_bounds = array<i64: 1, 32>}, {pipeline_mode = #tpu.pipeline_mode<synchronous>, transform_indices = @transform_3, window_bounds = array<i64: 32, 128>}, {pipeline_mode = #tpu.pipeline_mode<synchronous>, transform_indices = @transform_4, window_bounds = array<i64: 1, 128>}, {transform_indices = @transform_5, window_bounds = array<i64: 2, 128>}]} {
    %c0 = arith.constant 0 : index
    %c0_0 = arith.constant 0 : index
    %0 = vector.load %arg1[%c0, %c0_0] : memref<2x4xf32, #tpu.memory_space<vmem>>, vector<2x4xf32>
    %c0_1 = arith.constant 0 : index
    %c0_2 = arith.constant 0 : index
    %1 = vector.load %arg2[%c0_1, %c0_2] : memref<4x32xf32, #tpu.memory_space<vmem>>, vector<4x32xf32>
    %cst = arith.constant dense<0.000000e+00> : vector<2x32xf32>
    %2 = tpu.matmul %0, %1, %cst {dimension_numbers = #tpu.dot_dimension_numbers<[1], [0], [0], [1], [0, 0, 1, 1], [], []>} : vector<2x4xf32>, vector<4x32xf32>, vector<2x32xf32> -> vector<2x32xf32>
    %c0_3 = arith.constant 0 : index
    %c0_4 = arith.constant 0 : index
    %3 = vector.load %arg3[%c0_3, %c0_4] : memref<1x32xf32, #tpu.memory_space<vmem>>, vector<1x32xf32>
    %4 = vector.broadcast %3 : vector<1x32xf32> to vector<2x32xf32>
    %5 = arith.addf %2, %4 : vector<2x32xf32>
    %cst_5 = arith.constant 0.000000e+00 : f32
    %6 = vector.broadcast %cst_5 : f32 to vector<2x32xf32>
    %7 = arith.maximumf %5, %6 : vector<2x32xf32>
    %c0_6 = arith.constant 0 : index
    %c0_7 = arith.constant 0 : index
    %8 = vector.load %arg4[%c0_6, %c0_7] : memref<32x128xf32, #tpu.memory_space<vmem>>, vector<32x128xf32>
    %cst_8 = arith.constant dense<0.000000e+00> : vector<2x128xf32>
    %9 = tpu.matmul %7, %8, %cst_8 {dimension_numbers = #tpu.dot_dimension_numbers<[1], [0], [0], [1], [0, 0, 1, 1], [], []>} : vector<2x32xf32>, vector<32x128xf32>, vector<2x128xf32> -> vector<2x128xf32>
    %c0_9 = arith.constant 0 : index
    %c0_10 = arith.constant 0 : index
    %10 = vector.load %arg5[%c0_9, %c0_10] : memref<1x128xf32, #tpu.memory_space<vmem>>, vector<1x128xf32>
    %11 = vector.broadcast %10 : vector<1x128xf32> to vector<2x128xf32>
    %12 = arith.addf %9, %11 : vector<2x128xf32>
    %c0_11 = arith.constant 0 : index
    %c0_12 = arith.constant 0 : index
    %13 = vector.load %arg6[%c0_11, %c0_12] : memref<2x128xf32, #tpu.memory_space<vmem>>, vector<2x128xf32>
    tpu.vector_store %arg6[%c0_11, %c0_12], %12 {strides = array<i32>} : memref<2x128xf32, #tpu.memory_space<vmem>>, vector<2x128xf32>,
    return
  }
  func.func @transform_0(%arg0: i32) -> (i32, i32) {
    %c0_i32 = arith.constant 0 : i32
    %c0_i32_0 = arith.constant 0 : i32
    return %arg0, %c0_i32 : i32, i32
  }
  func.func @transform_1(%arg0: i32) -> (i32, i32) {
    %c0_i32 = arith.constant 0 : i32
    %c0_i32_0 = arith.constant 0 : i32
    %c0_i32_1 = arith.constant 0 : i32
    return %c0_i32, %c0_i32_0 : i32, i32
  }
  func.func @transform_2(%arg0: i32) -> (i32, i32) {
    %c0_i32 = arith.constant 0 : i32
    %c0_i32_0 = arith.constant 0 : i32
    %c0_i32_1 = arith.constant 0 : i32
    return %c0_i32, %c0_i32_0 : i32, i32
  }
  func.func @transform_3(%arg0: i32) -> (i32, i32) {
    %c0_i32 = arith.constant 0 : i32
    %c0_i32_0 = arith.constant 0 : i32
    %c0_i32_1 = arith.constant 0 : i32
    return %c0_i32, %c0_i32_0 : i32, i32
  }
  func.func @transform_4(%arg0: i32) -> (i32, i32) {
    %c0_i32 = arith.constant 0 : i32
    %c0_i32_0 = arith.constant 0 : i32
    %c0_i32_1 = arith.constant 0 : i32
    return %c0_i32, %c0_i32_0 : i32, i32
  }
  func.func @transform_5(%arg0: i32) -> (i32, i32) {
    %c0_i32 = arith.constant 0 : i32
    %c0_i32_0 = arith.constant 0 : i32
    return %arg0, %c0_i32 : i32, i32
  }
}

</mosaic_0001>

<llo_original>
// kernel: net_forward.1
$region0: #{net_forward.1}
  #allocation0 [shape = 'u32[]', space=smem, size = 0x4, offset = 0x4, fixed_abs, tag = 'smem constant byte address 0x4 - core index']
  #allocation1 [shape = 'u32[72,128]{1,0:T(1,128)}', space=vmem, size = 0x9000, scoped, tag = 'internal scratch']
  %s0 = inlined_call_operand.hbm [shape: f32[2,4], index: 0, kind: input, shape index: {}]
  %s1 = inlined_call_operand.hbm [shape: f32[4,32], index: 1, kind: input, shape index: {}]
  %s2 = inlined_call_operand.vmem [shape: f32[1,32], index: 2, kind: input, shape index: {}]
  %s3 = inlined_call_operand.hbm [shape: f32[32,128], index: 3, kind: input, shape index: {}]
  %s4 = inlined_call_operand.vmem [shape: f32[1,128], index: 4, kind: input, shape index: {}]
  %s5 = inlined_call_operand.hbm [shape: f32[2,128], index: 5, kind: output, shape index: {}]
  %s6 = sld [smem:[#allocation0]]
  $region42: #{net_forward.1} parent=0
    _
  %s8 = ssub.s32 1, %s6
  %s9 = scalar_select 0, %s8, %s6
  $region1: #{net_forward.1} parent=0
    #allocation2 [shape = 'u8[1024]{0}', space=vmem, size = 0x400, scoped, tag = 'input window, operand 0, single buffered']
    #allocation3 [shape = 's32[1]{0}', space=sflag, size = 0x4, scoped, tag = 'scoped memory for net_forward.1']
    #allocation4 [shape = 's32[1]{0}', space=sflag, size = 0x4, scoped, tag = 'scoped memory for net_forward.1']
    #allocation5 [shape = 'u8[2048]{0}', space=vmem, size = 0x800, scoped, tag = 'input window, operand 1, single buffered']
    #allocation6 [shape = 's32[1]{0}', space=sflag, size = 0x4, scoped, tag = 'scoped memory for net_forward.1']
    #allocation7 [shape = 'u8[16384]{0}', space=vmem, size = 0x4000, scoped, tag = 'input window, operand 3, single buffered']
    #allocation8 [shape = 'u8[1024]{0}', space=vmem, size = 0x400, scoped, tag = 'output window, operand 0, single buffered']
    %10 = vsyncpa [#allocation3], 0
    %11 = vsyncpa [#allocation6], 0
    %12 = vsyncpa [#allocation4], 0
    // Predicated region
    $region2: #{net_forward.1} parent=1 // pred_check
      _
    $region3: #{net_forward.1} parent=1 // pred_check_branch
      %14 = sbr.rel (0) target = $region5
    $region4: #{net_forward.1} parent=1 // pred_region
      %16 = vsyncadd [#allocation3], 0
      %s18 = sshll.u32 %s0, 4
      %s19 = int_to_ptr.hbm [resolvable:$true] %s18
      %s20 = sshll.u32 [#allocation2], 4
      %s21 = int_to_ptr.vmem [resolvable:$true] %s20
      %23 = dma.hbm_to_vmem [thread:$0]  %s19, 32, %s21, [#allocation3]
    $region5: #{net_forward.1} parent=1 // pred_fallthru
      _
    // Predicated region
    $region6: #{net_forward.1} parent=1 // pred_check
      _
    $region7: #{net_forward.1} parent=1 // pred_check_branch
      %25 = sbr.rel (0) target = $region9
    $region8: #{net_forward.1} parent=1 // pred_region
      %27 = vsyncadd [#allocation6], 0
      %s29 = sshll.u32 %s1, 4
      %s30 = int_to_ptr.hbm [resolvable:$true] %s29
      %s31 = sshll.u32 [#allocation5], 4
      %s32 = int_to_ptr.vmem [resolvable:$true] %s31
      %34 = dma.hbm_to_vmem [thread:$0]  %s30, 64, %s32, [#allocation6]
    $region9: #{net_forward.1} parent=1 // pred_fallthru
      _
    // Predicated region
    $region10: #{net_forward.1} parent=1 // pred_check
      _
    $region11: #{net_forward.1} parent=1 // pred_check_branch
      %36 = sbr.rel (0) target = $region13
    $region12: #{net_forward.1} parent=1 // pred_region
      _
    $region13: #{net_forward.1} parent=1 // pred_fallthru
      _
    // Predicated region
    $region14: #{net_forward.1} parent=1 // pred_check
      _
    $region15: #{net_forward.1} parent=1 // pred_check_branch
      %38 = sbr.rel (0) target = $region17
    $region16: #{net_forward.1} parent=1 // pred_region
      %40 = vsyncadd [#allocation6], 0
      %s41 = sshll.u32 %s3, 4
      %s42 = int_to_ptr.hbm [resolvable:$true] %s41
      %s43 = sshll.u32 [#allocation7], 4
      %s44 = int_to_ptr.vmem [resolvable:$true] %s43
      %49 = dma.hbm_to_vmem [thread:$0]  %s42, 512, %s44, [#allocation6], 128, 128, 8
    $region17: #{net_forward.1} parent=1 // pred_fallthru
      _
    // Predicated region
    $region18: #{net_forward.1} parent=1 // pred_check
      _
    $region19: #{net_forward.1} parent=1 // pred_check_branch
      %51 = sbr.rel (0) target = $region21
    $region20: #{net_forward.1} parent=1 // pred_region
      _
    $region21: #{net_forward.1} parent=1 // pred_fallthru
      _
    // Predicated region
    $region22: #{net_forward.1} parent=1 // pred_check
      _
    $region23: #{net_forward.1} parent=1 // pred_check_branch
      %53 = sbr.rel (0) target = $region25
    $region24: #{net_forward.1} parent=1 // pred_region
      %55 = dma.done [#allocation3], 32
    $region25: #{net_forward.1} parent=1 // pred_fallthru
      _
    // Predicated region
    $region26: #{net_forward.1} parent=1 // pred_check
      _
    $region27: #{net_forward.1} parent=1 // pred_check_branch
      %57 = sbr.rel (0) target = $region29
    $region28: #{net_forward.1} parent=1 // pred_region
      %59 = dma.done [#allocation6], 64
    $region29: #{net_forward.1} parent=1 // pred_fallthru
      _
    // Predicated region
    $region30: #{net_forward.1} parent=1 // pred_check
      _
    $region31: #{net_forward.1} parent=1 // pred_check_branch
      %61 = sbr.rel (0) target = $region33
    $region32: #{net_forward.1} parent=1 // pred_region
      %63 = dma.done [#allocation6], 512
    $region33: #{net_forward.1} parent=1 // pred_fallthru
      _
    %v64 = vld [vmem:[#allocation2] sm:$0x3]
    %v65 = vld [vmem:[#allocation5] sm:$0xf]
    %v66 = vld [vmem:[%s2] sm:$0x1]
    %v68 = vperm.slane %v66, 0
    %vm70 = vcmask 31744
    %v72 = vsel %vm70, %v64, 0
    %vm74 = vcmask 1043456
    %v76 = vsel %vm74, %v65, 0
    %78 = vmatpush.msra.mxu0 0.0
    %79 = vmatpush.msra.mxu0 0.0
    %80 = vmatpush.msra.mxu0 0.0
    %81 = vmatpush.msra.mxu0 0.0
    %82 = vmatpush.msra.mxu0 0.0
    %83 = vmatpush.msra.mxu0 0.0
    %84 = vmatpush.msra.mxu0 0.0
    %85 = vmatpush.msra.mxu0 0.0
    %86 = vmatpush.msra.mxu0 0.0
    %87 = vmatpush.msra.mxu0 0.0
    %88 = vmatpush.msra.mxu0 0.0
    %89 = vmatpush.msra.mxu0 0.0
    %90 = vmatpush.msra.mxu0 0.0
    %91 = vmatpush.msra.mxu0 0.0
    %92 = vmatpush.msra.mxu0 0.0
    %93 = vmatpush.msra.mxu0 %v76
    %94 = vmatmul.f32.gmra.mxu0 %v72
    %v95 = vpop.f32.mrf.mxu0
    %v96 = vadd.f32 %v68, %v95
    %97 = vdwg.mxu0
    %v98 = vmax.f32 %v96, 0.0
    %v99 = vld [vmem:[#allocation7] sm:$0xff]
    %v100 = vld [vmem:[#allocation7 + $0x8] sm:$0xff]
    %v101 = vld [vmem:[#allocation7 + $0x10] sm:$0xff]
    %v102 = vld [vmem:[#allocation7 + $0x18] sm:$0xff]
    %v103 = vld [vmem:[%s4] sm:$0x1]
    %v105 = vperm.slane %v103, 0
    %vm107 = vcmask 261120
    %v109 = vsel %vm107, %v98, 0
    %111 = vmatpush.msra.mxu0 0.0
    %112 = vmatpush.msra.mxu0 0.0
    %113 = vmatpush.msra.mxu0 0.0
    %114 = vmatpush.msra.mxu0 0.0
    %115 = vmatpush.msra.mxu0 0.0
    %116 = vmatpush.msra.mxu0 0.0
    %117 = vmatpush.msra.mxu0 0.0
    %118 = vmatpush.msra.mxu0 0.0
    %119 = vmatpush.msra.mxu0 0.0
    %120 = vmatpush.msra.mxu0 0.0
    %121 = vmatpush.msra.mxu0 0.0
    %122 = vmatpush.msra.mxu0 0.0
    %123 = vmatpush.msra.mxu0 %v102
    %124 = vmatpush.msra.mxu0 %v101
    %125 = vmatpush.msra.mxu0 %v100
    %126 = vmatpush.msra.mxu0 %v99
    %127 = vmatmul.f32.gmra.mxu0 %v109
    %v128 = vpop.f32.mrf.mxu0
    %v129 = vadd.f32 %v105, %v128
    %130 = vdwg.mxu0
    %131 = vst [vmem:[#allocation8] sm:$0x3] %v129
    // Predicated region
    $region34: #{net_forward.1} parent=1 // pred_check
      _
    $region35: #{net_forward.1} parent=1 // pred_check_branch
      %133 = sbr.rel (0) target = $region37
    $region36: #{net_forward.1} parent=1 // pred_region
      %135 = vsyncadd [#allocation4], 0
      %s137 = sshll.u32 [#allocation8], 4
      %s138 = int_to_ptr.vmem [resolvable:$true] %s137
      %s139 = sshll.u32 %s5, 4
      %s140 = int_to_ptr.hbm [resolvable:$true] %s139
      %142 = dma.vmem_to_hbm [thread:$0]  %s138, 32, %s140, [#allocation4]
    $region37: #{net_forward.1} parent=1 // pred_fallthru
      _
    // Predicated region
    $region38: #{net_forward.1} parent=1 // pred_check
      _
    $region39: #{net_forward.1} parent=1 // pred_check_branch
      %144 = sbr.rel (0) target = $region41
    $region40: #{net_forward.1} parent=1 // pred_region
      %146 = dma.done [#allocation4], 32
    $region41: #{net_forward.1} parent=1 // pred_fallthru
      _
    %147 = vsyncpa [#allocation3], 1
    %148 = vsyncpa [#allocation6], 1
    %149 = vsyncpa [#allocation4], 1

</llo_original>
